<compile_context>
chip_gen: v7x
topology: tpu7x:2x2x1
jax: 0.10.0
libtpu: 0.0.40
codegen_flags: <defaults>
</compile_context>

<pallas_src>
import math

import jax
import jax.numpy as jnp
from jax import lax
from jax.experimental import pallas as pl
from jax.experimental.pallas import tpu as pltpu

_SMOOTH = 1.0
_MIN_STEPS = 4          # target grid steps per partition (DMA/compute overlap)
_TINY_BYTES = 1 << 20   # below this, a single full-width block (step overhead dominates)


def _cdiv(a, b):
    return -(-a // b)


def _round_up(a, b):
    return _cdiv(a, b) * b


def _vmem_budgets():
    """(input-block VMEM budget, scoped VMEM limit), per TPU generation."""
    try:
        cap = int(pltpu.get_tpu_info().vmem_capacity_bytes)
    except Exception:
        cap = 64 * 1024 * 1024  # conservative: v7x per-TensorCore VMEM
    vmem_limit = min(cap // 2, 64 * 1024 * 1024)    # 32 MiB on v7x, 64 MiB on v5e/v6e
    input_budget = min(cap // 4, 24 * 1024 * 1024)  # 16 MiB on v7x, 24 MiB on v5e/v6e
    return input_budget, vmem_limit


def _fold_factor(n, d, sublane_target):
    """Largest power-of-two K (<= the K that fully fills sublanes) with K | d."""
    if n % sublane_target == 0:
        return 1
    k = sublane_target // math.gcd(n, sublane_target)
    while k > 1 and d % k != 0:
        k //= 2
    return max(k, 1)


def _choose_grid(d_row, budget_chunk, total_bytes, force_chunk):
    """Pick (parts, steps, chunk): chunk is a multiple of 128 and
    parts * steps == cdiv(d_row, chunk), so no block is fully out of bounds."""
    max_chunk = _round_up(d_row, 128)
    if force_chunk is not None:  # test hook / manual override
        budget_chunk = min(budget_chunk, max(128, (force_chunk // 128) * 128))
    budget_chunk = max(128, min(budget_chunk, max_chunk))

    if total_bytes <= _TINY_BYTES and force_chunk is None:
        # Tiny tensor: one full-width block; per-step overhead would dominate.
        return 1, 1, max_chunk

    # Large input: 2 partitions ("parallel" -> both TensorCores on v7x) and at
    # least _MIN_STEPS steps per partition so the software pipeline overlaps
    # DMA with compute.
    parts = 2
    nc_min = max(_cdiv(d_row, budget_chunk), parts * _MIN_STEPS)
    nc_start = _round_up(nc_min, parts)
    for nc in range(nc_start, nc_start + 64 * parts, parts):
        chunk = max(128, _round_up(_cdiv(d_row, nc), 128))
        if chunk > budget_chunk:
            continue
        nc_act = _cdiv(d_row, chunk)
        if nc_act % parts == 0:
            return parts, nc_act // parts, chunk
    # Fallback (e.g. d_row too small for an even 2-way split): one partition.
    chunk = max(128, min(budget_chunk, _round_up(_cdiv(d_row, _MIN_STEPS), 128)))
    chunk = min(chunk, max_chunk)
    return 1, _cdiv(d_row, chunk), chunk


def _make_dice_kernel(rows, chunk, tail, need_mask):
    """Grid (parts, steps): accumulates lane-dense (rows, 128) partial sums of
    x*t and x+t into the resident output blocks."""
    lane_tiles = chunk // 128

    def block_partials(x_ref, t_ref, limit):
        p_acc = jnp.zeros((rows, 128), jnp.float32)
        s_acc = jnp.zeros((rows, 128), jnp.float32)
        for j in range(lane_tiles):
            lo = j * 128
            if limit is not None and lo >= limit:
                break  # lane tile entirely past the logical row width
            xj = x_ref[:, lo:lo + 128]
            tj = t_ref[:, lo:lo + 128]
            if limit is not None and lo + 128 > limit:
                lane = lax.broadcasted_iota(jnp.int32, (rows, 128), 1)
                valid = (lo + lane) < limit
                xj = jnp.where(valid, xj, jnp.zeros_like(xj))
                tj = jnp.where(valid, tj, jnp.zeros_like(tj))
            # Elementwise math in the input dtype (bf16 halves VPU op count on
            # v6e/v7x); partial sums accumulate in f32.
            p_acc = p_acc + (xj * tj).astype(jnp.float32)
            s_acc = s_acc + (xj.astype(jnp.float32) + tj.astype(jnp.float32))
        return p_acc, s_acc

    def kernel(x_ref, t_ref, inter_ref, st_ref):
        k = pl.program_id(1)

        # New partition: reset the (resident) lane-dense accumulators.
        @pl.when(k == 0)
        def _():
            inter_ref[...] = jnp.zeros_like(inter_ref)
            st_ref[...] = jnp.zeros_like(st_ref)

        if not need_mask:
            pp, ss = block_partials(x_ref, t_ref, None)
            inter_ref[0] += pp
            st_ref[0] += ss
        else:
            # Only the globally-last block is ragged; gate the mask with
            # pl.when so steady-state iterations carry no masking work.
            is_ragged = jnp.logical_and(
                pl.program_id(0) == pl.num_programs(0) - 1,
                k == pl.num_programs(1) - 1)

            @pl.when(jnp.logical_not(is_ragged))
            def _():
                pp, ss = block_partials(x_ref, t_ref, None)
                inter_ref[0] += pp
                st_ref[0] += ss

            @pl.when(is_ragged)
            def _():
                pp, ss = block_partials(x_ref, t_ref, tail)
                inter_ref[0] += pp
                st_ref[0] += ss

    return kernel


def dice_loss(input_arr, target_arr, *, max_chunk_lanes=None):
    """Pallas TPU implementation of DiceLoss.forward (returns a scalar)."""
    n = target_arr.shape[0]
    assert input_arr.shape[0] == n
    d = 1
    for s in input_arr.shape[1:]:
        d *= s

    isz_x = jnp.dtype(input_arr.dtype).itemsize
    isz_t = jnp.dtype(target_arr.dtype).itemsize

    # Fold small batches onto the sublane axis so vregs are fully populated.
    sublane_target = max(8, 32 // max(1, min(isz_x, isz_t)))
    fold = _fold_factor(n, d, sublane_target)
    rows = n * fold
    d_row = d // fold

    x = input_arr.reshape(rows, d_row)
    t = target_arr.reshape(rows, d_row)

    input_budget, vmem_limit = _vmem_budgets()

    # Per-lane VMEM bytes: 2 pipeline buffers per input plus an allowance for
    # in-kernel f32 temporaries (lane-tile streaming keeps temporaries small).
    bytes_per_lane = 2 * rows * (isz_x + isz_t) + 2 * rows * 4
    budget_chunk = max(128, (input_budget // bytes_per_lane) // 128 * 128)

    total_bytes = rows * d_row * (isz_x + isz_t)
    parts, steps, chunk = _choose_grid(d_row, budget_chunk, total_bytes,
                                       max_chunk_lanes)
    num_chunks = parts * steps
    need_mask = num_chunks * chunk != d_row
    tail = d_row - (num_chunks - 1) * chunk  # valid lanes in the last block
    # TODO(synk): for extremely large N (rows), also tile the row axis instead
    # of only clamping the chunk width.
    # TODO(synk): confirm with a profile that dimension_semantics=("parallel",
    # ...) shards the partition axis across both TensorCores on v7x; if not,
    # switch to pltpu.CORE_PARALLEL / pl.core_map.

    def in_idx(p, k):
        return (0, p * steps + k)

    def make_in_spec():
        if chunk <= 512 and num_chunks >= 4:
            try:  # deeper buffering hides DMA issue latency at narrow chunks
                return pl.BlockSpec((rows, chunk), in_idx,
                                    pipeline_mode=pl.Buffered(3))
            except Exception:
                pass
        return pl.BlockSpec((rows, chunk), in_idx)

    out_sds = jax.ShapeDtypeStruct((parts, rows, 128), jnp.float32)
    out_spec = pl.BlockSpec((1, rows, 128), lambda p, k: (p, 0, 0))

    kernel = _make_dice_kernel(rows, chunk, tail, need_mask)

    inter_p, st_p = pl.pallas_call(
        kernel,
        out_shape=(out_sds, out_sds),
        grid_spec=pltpu.PrefetchScalarGridSpec(
            num_scalar_prefetch=0,
            grid=(parts, steps),
            in_specs=[make_in_spec(), make_in_spec()],
            out_specs=[out_spec, out_spec],
        ),
        compiler_params=pltpu.CompilerParams(
            dimension_semantics=("parallel", "arbitrary"),
            vmem_limit_bytes=vmem_limit,
        ),
    )(x, t)

    # Cheap epilogue in plain JAX: cross-lane + cross-partition reduce, un-fold
    # rows back to samples, apply the dice formula.
    def _combine(a):  # (parts, rows, 128) -> (n,)
        return a.sum(axis=(0, 2)).reshape(n, fold).sum(axis=1)

    inter = _combine(inter_p)
    st = _combine(st_p)

    per_sample = 2.0 * (inter + _SMOOTH) / (st + _SMOOTH)
    return 1.0 - per_sample.sum() / n


def _dice_loss_ref(input_arr, target_arr):
    n = target_arr.shape[0]
    xf = input_arr.reshape(n, -1).astype(jnp.float32)
    tf = target_arr.reshape(n, -1).astype(jnp.float32)
    inter = (xf * tf).sum(1)
    per = 2.0 * (inter + _SMOOTH) / (xf.sum(1) + tf.sum(1) + _SMOOTH)
    return 1.0 - per.sum() / n


if __name__ == "__main__":
    key = jax.random.PRNGKey(0)
    k1, k2 = jax.random.split(key)

    # Main check: N=2, C=4, H=W=16 (tiny path: one full-width block).
    x = jax.random.uniform(k1, (2, 4, 16, 16), dtype=jnp.float32)
    tgt = (jax.random.uniform(k2, (2, 4, 16, 16)) > 0.5).astype(jnp.float32)
    loss = jax.block_until_ready(dice_loss(x, tgt))
    ref = _dice_loss_ref(x, tgt)
    assert jnp.allclose(loss, ref, rtol=1e-5, atol=1e-5), (loss, ref)

    # Ragged-tail path: folded rows=8, D_row=300, forced 128-lane chunks
    # (3 blocks, last block masked under pl.when).
    x2 = jax.random.uniform(k1, (2, 3, 25, 16), dtype=jnp.float32)
    t2 = (jax.random.uniform(k2, (2, 3, 25, 16)) > 0.5).astype(jnp.float32)
    loss2 = jax.block_until_ready(dice_loss(x2, t2, max_chunk_lanes=128))
    ref2 = _dice_loss_ref(x2, t2)
    assert jnp.allclose(loss2, ref2, rtol=1e-5, atol=1e-5), (loss2, ref2)

    # Dual-partition + deep-buffer path: D_row=1024, forced 128-lane chunks
    # (parts=2, steps=4, Buffered(3), no masking).
    x3 = jax.random.uniform(k1, (2, 4, 32, 32), dtype=jnp.float32)
    t3 = (jax.random.uniform(k2, (2, 4, 32, 32)) > 0.5).astype(jnp.float32)
    loss3 = jax.block_until_ready(dice_loss(x3, t3, max_chunk_lanes=128))
    ref3 = _dice_loss_ref(x3, t3)
    assert jnp.allclose(loss3, ref3, rtol=1e-5, atol=1e-5), (loss3, ref3)

    # Auto (non-tiny) path: VMEM-budgeted wide chunks, 2 partitions x >=4 steps.
    x4 = jax.random.uniform(k1, (2, 8, 128, 128), dtype=jnp.float32)
    t4 = (jax.random.uniform(k2, (2, 8, 128, 128)) > 0.5).astype(jnp.float32)
    loss4 = jax.block_until_ready(dice_loss(x4, t4))
    ref4 = _dice_loss_ref(x4, t4)
    assert jnp.allclose(loss4, ref4, rtol=1e-4, atol=1e-5), (loss4, ref4)

    # bf16 inputs stream half the HBM bytes; products in bf16, accumulation f32.
    xb = x.astype(jnp.bfloat16)
    tb = tgt.astype(jnp.bfloat16)
    loss5 = jax.block_until_ready(dice_loss(xb, tb))
    ref5 = _dice_loss_ref(xb.astype(jnp.float32), tb.astype(jnp.float32))
    assert jnp.allclose(loss5, ref5, rtol=2e-2, atol=2e-2), (loss5, ref5)

    print("KERNEL_OK")
</pallas_src>

<mosaic_0001>
module attributes {stable_mosaic.version = 11 : i64} {
  func.func @kernel(%arg0: i32, %arg1: i32, %arg2: memref<8x256xf32, #tpu.memory_space<vmem>>, %arg3: memref<8x256xf32, #tpu.memory_space<vmem>>, %arg4: memref<1x8x128xf32, #tpu.memory_space<vmem>>, %arg5: memref<1x8x128xf32, #tpu.memory_space<vmem>>) attributes {dimension_semantics = [#tpu.dimension_semantics<parallel>, #tpu.dimension_semantics<arbitrary>], iteration_bounds = array<i64: 1, 1>, scalar_prefetch = 0 : i64, scratch_operands = 0 : i64, tpu.core_type = #tpu.core_type<tc>, window_params = [{transform_indices = @transform_0, window_bounds = array<i64: 8, 256>}, {transform_indices = @transform_1, window_bounds = array<i64: 8, 256>}, {transform_indices = @transform_2, window_bounds = array<i64: 1, 8, 128>}, {transform_indices = @transform_3, window_bounds = array<i64: 1, 8, 128>}]} {
    %c0_i32 = arith.constant 0 : i32
    %0 = arith.cmpi eq, %arg1, %c0_i32 : i32
    %1 = arith.extui %0 : i1 to i32
    %c0_i32_0 = arith.constant 0 : i32
    %2 = arith.cmpi ne, %1, %c0_i32_0 : i32
    scf.if %2 {
      %cst_20 = arith.constant 0.000000e+00 : f32
      %29 = vector.broadcast %cst_20 : f32 to vector<1x8x128xf32>
      %c0_21 = arith.constant 0 : index
      %c0_22 = arith.constant 0 : index
      %c0_23 = arith.constant 0 : index
      %30 = vector.load %arg4[%c0_21, %c0_22, %c0_23] : memref<1x8x128xf32, #tpu.memory_space<vmem>>, vector<1x8x128xf32>
      tpu.vector_store %arg4[%c0_21, %c0_22, %c0_23], %29 {strides = array<i32>} : memref<1x8x128xf32, #tpu.memory_space<vmem>>, vector<1x8x128xf32>,
      %cst_24 = arith.constant 0.000000e+00 : f32
      %31 = vector.broadcast %cst_24 : f32 to vector<1x8x128xf32>
      %c0_25 = arith.constant 0 : index
      %c0_26 = arith.constant 0 : index
      %c0_27 = arith.constant 0 : index
      %32 = vector.load %arg5[%c0_25, %c0_26, %c0_27] : memref<1x8x128xf32, #tpu.memory_space<vmem>>, vector<1x8x128xf32>
      tpu.vector_store %arg5[%c0_25, %c0_26, %c0_27], %31 {strides = array<i32>} : memref<1x8x128xf32, #tpu.memory_space<vmem>>, vector<1x8x128xf32>,
    } else {
    }
    %cst = arith.constant 0.000000e+00 : f32
    %3 = vector.broadcast %cst : f32 to vector<8x128xf32>
    %cst_1 = arith.constant 0.000000e+00 : f32
    %4 = vector.broadcast %cst_1 : f32 to vector<8x128xf32>
    %c0 = arith.constant 0 : index
    %c0_2 = arith.constant 0 : index
    %5 = vector.load %arg2[%c0, %c0_2] : memref<8x256xf32, #tpu.memory_space<vmem>>, vector<8x128xf32>
    %c0_3 = arith.constant 0 : index
    %c0_4 = arith.constant 0 : index
    %6 = vector.load %arg3[%c0_3, %c0_4] : memref<8x256xf32, #tpu.memory_space<vmem>>, vector<8x128xf32>
    %7 = arith.mulf %5, %6 : vector<8x128xf32>
    %8 = arith.addf %3, %7 : vector<8x128xf32>
    %9 = arith.addf %5, %6 : vector<8x128xf32>
    %10 = arith.addf %4, %9 : vector<8x128xf32>
    %c0_5 = arith.constant 0 : index
    %c128 = arith.constant 128 : index
    %11 = vector.load %arg2[%c0_5, %c128] : memref<8x256xf32, #tpu.memory_space<vmem>>, vector<8x128xf32>
    %c0_6 = arith.constant 0 : index
    %c128_7 = arith.constant 128 : index
    %12 = vector.load %arg3[%c0_6, %c128_7] : memref<8x256xf32, #tpu.memory_space<vmem>>, vector<8x128xf32>
    %13 = arith.mulf %11, %12 : vector<8x128xf32>
    %14 = arith.addf %8, %13 : vector<8x128xf32>
    %15 = arith.addf %11, %12 : vector<8x128xf32>
    %16 = arith.addf %10, %15 : vector<8x128xf32>
    %c0_8 = arith.constant 0 : index
    %c0_9 = arith.constant 0 : index
    %c0_10 = arith.constant 0 : index
    %17 = vector.load %arg4[%c0_8, %c0_9, %c0_10] : memref<1x8x128xf32, #tpu.memory_space<vmem>>, vector<1x8x128xf32>
    %18 = vector.shape_cast %17 : vector<1x8x128xf32> to vector<8x128xf32>
    %19 = arith.addf %18, %14 : vector<8x128xf32>
    %c0_11 = arith.constant 0 : index
    %c0_12 = arith.constant 0 : index
    %c0_13 = arith.constant 0 : index
    %20 = vector.load %arg4[%c0_11, %c0_12, %c0_13] : memref<1x8x128xf32, #tpu.memory_space<vmem>>, vector<1x8x128xf32>
    %21 = vector.shape_cast %20 : vector<1x8x128xf32> to vector<8x128xf32>
    %22 = vector.shape_cast %19 : vector<8x128xf32> to vector<1x8x128xf32>
    tpu.vector_store %arg4[%c0_11, %c0_12, %c0_13], %22 {strides = array<i32>} : memref<1x8x128xf32, #tpu.memory_space<vmem>>, vector<1x8x128xf32>,
    %c0_14 = arith.constant 0 : index
    %c0_15 = arith.constant 0 : index
    %c0_16 = arith.constant 0 : index
    %23 = vector.load %arg5[%c0_14, %c0_15, %c0_16] : memref<1x8x128xf32, #tpu.memory_space<vmem>>, vector<1x8x128xf32>
    %24 = vector.shape_cast %23 : vector<1x8x128xf32> to vector<8x128xf32>
    %25 = arith.addf %24, %16 : vector<8x128xf32>
    %c0_17 = arith.constant 0 : index
    %c0_18 = arith.constant 0 : index
    %c0_19 = arith.constant 0 : index
    %26 = vector.load %arg5[%c0_17, %c0_18, %c0_19] : memref<1x8x128xf32, #tpu.memory_space<vmem>>, vector<1x8x128xf32>
    %27 = vector.shape_cast %26 : vector<1x8x128xf32> to vector<8x128xf32>
    %28 = vector.shape_cast %25 : vector<8x128xf32> to vector<1x8x128xf32>
    tpu.vector_store %arg5[%c0_17, %c0_18, %c0_19], %28 {strides = array<i32>} : memref<1x8x128xf32, #tpu.memory_space<vmem>>, vector<1x8x128xf32>,
    return
  }
  func.func @transform_0(%arg0: i32, %arg1: i32) -> (i32, i32) {
    %c1_i32 = arith.constant 1 : i32
    %0 = arith.muli %arg0, %c1_i32 : i32
    %1 = arith.addi %0, %arg1 : i32
    %c0_i32 = arith.constant 0 : i32
    %c0_i32_0 = arith.constant 0 : i32
    return %c0_i32, %1 : i32, i32
  }
  func.func @transform_1(%arg0: i32, %arg1: i32) -> (i32, i32) {
    %c1_i32 = arith.constant 1 : i32
    %0 = arith.muli %arg0, %c1_i32 : i32
    %1 = arith.addi %0, %arg1 : i32
    %c0_i32 = arith.constant 0 : i32
    %c0_i32_0 = arith.constant 0 : i32
    return %c0_i32, %1 : i32, i32
  }
  func.func @transform_2(%arg0: i32, %arg1: i32) -> (i32, i32, i32) {
    %c0_i32 = arith.constant 0 : i32
    %c0_i32_0 = arith.constant 0 : i32
    %c0_i32_1 = arith.constant 0 : i32
    return %arg0, %c0_i32, %c0_i32_0 : i32, i32, i32
  }
  func.func @transform_3(%arg0: i32, %arg1: i32) -> (i32, i32, i32) {
    %c0_i32 = arith.constant 0 : i32
    %c0_i32_0 = arith.constant 0 : i32
    %c0_i32_1 = arith.constant 0 : i32
    return %arg0, %c0_i32, %c0_i32_0 : i32, i32, i32
  }
}

</mosaic_0001>

<llo_original>
// kernel: tpu_custom_call.1
$region0: #{tpu_custom_call.1}
  #allocation0 [shape = 'u32[]', space=smem, size = 0x4, offset = 0x4, fixed_abs, tag = 'smem constant byte address 0x4 - core index']
  #allocation1 [shape = 'u32[144,128]{1,0:T(1,128)}', space=vmem, size = 0x12000, scoped, tag = 'internal scratch']
  %s0 = inlined_call_operand.hbm [shape: f32[8,256], index: 0, kind: input, shape index: {}]
  %s1 = inlined_call_operand.hbm [shape: f32[8,256], index: 1, kind: input, shape index: {}]
  %s2 = inlined_call_operand.hbm [shape: f32[1,8,128], index: 2, kind: output, shape index: {0}]
  %s3 = inlined_call_operand.hbm [shape: f32[1,8,128], index: 3, kind: output, shape index: {1}]
  %4 = xla_tuple %s2, %s3
  %s5 = sld [smem:[#allocation0]]
  $region38: #{tpu_custom_call.1} parent=0
    _
  %s7 = ssub.s32 1, %s5
  %s8 = scalar_select 0, %s7, %s5
  $region1: #{tpu_custom_call.1} parent=0
    #allocation2 [shape = 'u8[8192]{0}', space=vmem, size = 0x2000, scoped, tag = 'input window, operand 0, single buffered']
    #allocation3 [shape = 's32[1]{0}', space=sflag, size = 0x4, scoped, tag = 'scoped memory for tpu_custom_call.1']
    #allocation4 [shape = 's32[1]{0}', space=sflag, size = 0x4, scoped, tag = 'scoped memory for tpu_custom_call.1']
    #allocation5 [shape = 'u8[8192]{0}', space=vmem, size = 0x2000, scoped, tag = 'input window, operand 1, single buffered']
    #allocation6 [shape = 's32[1]{0}', space=sflag, size = 0x4, scoped, tag = 'scoped memory for tpu_custom_call.1']
    #allocation7 [shape = 'u8[4096]{0}', space=vmem, size = 0x1000, scoped, tag = 'output window, operand 0, single buffered']
    #allocation8 [shape = 'u8[4096]{0}', space=vmem, size = 0x1000, scoped, tag = 'output window, operand 1, single buffered']
    #allocation9 [shape = 's32[1]{0}', space=sflag, size = 0x4, scoped, tag = 'scoped memory for tpu_custom_call.1']
    %9 = vsyncpa [#allocation3], 0
    %10 = vsyncpa [#allocation6], 0
    %11 = vsyncpa [#allocation4], 0
    %12 = vsyncpa [#allocation9], 0
    // Predicated region
    $region2: #{tpu_custom_call.1} parent=1 // pred_check
      _
    $region3: #{tpu_custom_call.1} parent=1 // pred_check_branch
      %14 = sbr.rel (0) target = $region5
    $region4: #{tpu_custom_call.1} parent=1 // pred_region
      %s15 = sadd.s32 0, 0
      %s16 = smul.u32 2, %s15
      %s18 = ssub.s32 256, 256
      %19 = vsyncadd [#allocation3], %s18
      %s20 = smul.addr %s16, 128
      %s21 = scalar_lea.hbm %s0, %s20
      %s23 = sshll.u32 [#allocation2], 4
      %s24 = int_to_ptr.vmem [resolvable:$true] %s23
      %26 = dma.hbm_to_vmem [thread:$0]  %s21, 256, %s24, [#allocation3]
    $region5: #{tpu_custom_call.1} parent=1 // pred_fallthru
      _
    // Predicated region
    $region6: #{tpu_custom_call.1} parent=1 // pred_check
      _
    $region7: #{tpu_custom_call.1} parent=1 // pred_check_branch
      %28 = sbr.rel (0) target = $region9
    $region8: #{tpu_custom_call.1} parent=1 // pred_region
      %s29 = sadd.s32 0, 0
      %s30 = smul.u32 2, %s29
      %s32 = ssub.s32 256, 256
      %33 = vsyncadd [#allocation6], %s32
      %s34 = smul.addr %s30, 128
      %s35 = scalar_lea.hbm %s1, %s34
      %s37 = sshll.u32 [#allocation5], 4
      %s38 = int_to_ptr.vmem [resolvable:$true] %s37
      %40 = dma.hbm_to_vmem [thread:$0]  %s35, 256, %s38, [#allocation6]
    $region9: #{tpu_custom_call.1} parent=1 // pred_fallthru
      _
    // Predicated region
    $region10: #{tpu_custom_call.1} parent=1 // pred_check
      _
    $region11: #{tpu_custom_call.1} parent=1 // pred_check_branch
      %42 = sbr.rel (0) target = $region13
    $region12: #{tpu_custom_call.1} parent=1 // pred_region
      %43 = dma.done [#allocation3], 256
    $region13: #{tpu_custom_call.1} parent=1 // pred_fallthru
      _
    // Predicated region
    $region14: #{tpu_custom_call.1} parent=1 // pred_check
      _
    $region15: #{tpu_custom_call.1} parent=1 // pred_check_branch
      %45 = sbr.rel (0) target = $region17
    $region16: #{tpu_custom_call.1} parent=1 // pred_region
      %46 = dma.done [#allocation6], 256
    $region17: #{tpu_custom_call.1} parent=1 // pred_fallthru
      _
    %s47 = sadd.s32 0, 0
    %s48 = smul.u32 2, %s47
    %s49 = sadd.s32 0, 0
    %s50 = smul.u32 2, %s49
    %p51 = scmp.eq.s32.totalorder 0, 0
    // Predicated region
    $region18: #{tpu_custom_call.1} parent=1 // pred_check
      %p52 = pneg %p51
    $region19: #{tpu_custom_call.1} parent=1 // pred_check_branch
      %54 = sbr.rel (%p52) target = $region21
    $region20: #{tpu_custom_call.1} parent=1 // pred_region
      %55 = vst [vmem:[#allocation7] sm:$0xff] 0.0
      %56 = vst [vmem:[#allocation8] sm:$0xff] 0.0
    $region21: #{tpu_custom_call.1} parent=1 // pred_fallthru
      _
    %v57 = vld [vmem:[#allocation2] sm:$0xff]
    %v58 = vld [vmem:[#allocation5] sm:$0xff]
    %v59 = vmul.f32 %v57, %v58
    %v60 = vadd.f32 %v59, 0.0
    %v61 = vadd.f32 %v57, %v58
    %v62 = vadd.f32 %v61, 0.0
    %v63 = vld [vmem:[#allocation2 + $0x8] sm:$0xff]
    %v64 = vld [vmem:[#allocation5 + $0x8] sm:$0xff]
    %v65 = vmul.f32 %v63, %v64
    %v66 = vadd.f32 %v60, %v65
    %v67 = vadd.f32 %v63, %v64
    %v68 = vadd.f32 %v62, %v67
    %v69 = vld [vmem:[#allocation7] sm:$0xff]
    %v70 = vadd.f32 %v69, %v66
    %71 = vst [vmem:[#allocation7] sm:$0xff] %v70
    %v72 = vld [vmem:[#allocation8] sm:$0xff]
    %v73 = vadd.f32 %v72, %v68
    %74 = vst [vmem:[#allocation8] sm:$0xff] %v73
    // Predicated region
    $region22: #{tpu_custom_call.1} parent=1 // pred_check
      _
    $region23: #{tpu_custom_call.1} parent=1 // pred_check_branch
      %76 = sbr.rel (0) target = $region25
    $region24: #{tpu_custom_call.1} parent=1 // pred_region
      %s78 = ssub.s32 128, 128
      %79 = vsyncadd [#allocation4], %s78
      %s81 = sshll.u32 [#allocation7], 4
      %s82 = int_to_ptr.vmem [resolvable:$true] %s81
      %84 = dma.vmem_to_hbm [thread:$0]  %s82, 128, %s2, [#allocation4]
    $region25: #{tpu_custom_call.1} parent=1 // pred_fallthru
      _
    // Predicated region
    $region26: #{tpu_custom_call.1} parent=1 // pred_check
      _
    $region27: #{tpu_custom_call.1} parent=1 // pred_check_branch
      %86 = sbr.rel (0) target = $region29
    $region28: #{tpu_custom_call.1} parent=1 // pred_region
      %s88 = ssub.s32 128, 128
      %89 = vsyncadd [#allocation9], %s88
      %s91 = sshll.u32 [#allocation8], 4
      %s92 = int_to_ptr.vmem [resolvable:$true] %s91
      %94 = dma.vmem_to_hbm [thread:$0]  %s92, 128, %s3, [#allocation9]
    $region29: #{tpu_custom_call.1} parent=1 // pred_fallthru
      _
    // Predicated region
    $region30: #{tpu_custom_call.1} parent=1 // pred_check
      _
    $region31: #{tpu_custom_call.1} parent=1 // pred_check_branch
      %96 = sbr.rel (0) target = $region33
    $region32: #{tpu_custom_call.1} parent=1 // pred_region
      %97 = dma.done [#allocation4], 128
    $region33: #{tpu_custom_call.1} parent=1 // pred_fallthru
      _
    // Predicated region
    $region34: #{tpu_custom_call.1} parent=1 // pred_check
      _
    $region35: #{tpu_custom_call.1} parent=1 // pred_check_branch
      %99 = sbr.rel (0) target = $region37
    $region36: #{tpu_custom_call.1} parent=1 // pred_region
      %100 = dma.done [#allocation9], 128
    $region37: #{tpu_custom_call.1} parent=1 // pred_fallthru
      _
    %101 = vsyncpa [#allocation3], 1
    %102 = vsyncpa [#allocation6], 1
    %103 = vsyncpa [#allocation4], 1
    %104 = vsyncpa [#allocation9], 1

</llo_original>
